<compile_context>
chip_gen: v5e
topology: v5e:2x2
jax: 0.10.0
libtpu: 0.0.40
codegen_flags: <defaults>
</compile_context>

<pallas_src>
import math
from functools import lru_cache, partial

import numpy as np
import jax
import jax.numpy as jnp
from jax.experimental import pallas as pl
from jax.experimental.pallas import tpu as pltpu


# ----------------------------------------------------------------------------
# Host-side glue: 1-D bilinear-resize matrices matching F.interpolate
# ----------------------------------------------------------------------------
def make_resize_matrix(in_size: int, out_size: int, align_corners: bool) -> np.ndarray:
    """M[out, in] such that (M @ v) == 1-D linear interpolation of v (float64)."""
    m = np.zeros((out_size, in_size), dtype=np.float64)
    for i in range(out_size):
        if align_corners:
            src = 0.0 if out_size == 1 else i * (in_size - 1) / (out_size - 1)
        else:
            src = (i + 0.5) * (in_size / out_size) - 0.5
            src = max(src, 0.0)
        i0 = min(int(math.floor(src)), in_size - 1)
        i1 = min(i0 + 1, in_size - 1)
        lam = src - i0
        m[i, i0] += 1.0 - lam
        m[i, i1] += lam
    return m


def _split_offset(offset):
    if isinstance(offset, (tuple, list)):
        return int(offset[0]), int(offset[1])
    return int(offset), int(offset)


@lru_cache(maxsize=None)
def composite_operator(H: int, W: int, offsets_key) -> jax.Array:
    """Q [H*W, H*W] = sum_t (1/T) * (deaugment_t . augment_t).

    Built in float64 (exact fold of the TTA mean), cast to f32 and cached ON DEVICE so repeat
    forward calls pay no host rebuild and no host->HBM transfer.
    """
    T = len(offsets_key)
    q = np.zeros((H * W, H * W), dtype=np.float64)
    for ro, co in offsets_key:
        Hs, Ws = H + ro, W + co
        ra = make_resize_matrix(H, Hs, align_corners=False)   # [Hs, H]  augment rows
        ca = make_resize_matrix(W, Ws, align_corners=False)   # [Ws, W]  augment cols
        rd = make_resize_matrix(Hs, H, align_corners=True)    # [H, Hs]  deaugment rows
        cd = make_resize_matrix(Ws, W, align_corners=True)    # [W, Ws]  deaugment cols
        m = rd @ ra                  # [H, H]  rows sum to 1 (constant-preserving)
        n = ca.T @ cd.T              # [W, W]  cols sum to 1
        # z_flat = x_flat @ Qt  with  Qt[p*W+q', i*W+j] = m[i, p] * n[q', j]
        q += np.einsum("ip,qj->pqij", m, n).reshape(H * W, H * W) / T
    return jnp.asarray(q.astype(np.float32))


# ----------------------------------------------------------------------------
# Fused Pallas kernel: one grid step, batch packed into M
# ----------------------------------------------------------------------------
def _mstta_kernel(x_ref, q_ref, w_ref, b_ref, o_ref, *, B, Ci, Co):
    # x_ref: [B*Ci, HW]  q_ref: [HW, HW]  w_ref: [Co, Ci]  b_ref: [Co, 1]  o_ref: [B*Co, HW]
    # Fused augment->deaugment->mean spatial operator: one MXU matmul, M = B*Ci (full sublanes).
    y = jnp.dot(x_ref[...], q_ref[...], preferred_element_type=jnp.float32)
    w = w_ref[...]
    bias = b_ref[...]
    # 1x1 conv: tiny [Co, Ci] @ [Ci, HW] per batch element, statically unrolled (B is static).
    # Bias is added exactly once here (valid: bilinear resizes are constant-preserving, mean TTA).
    for b in range(B):
        o_ref[pl.ds(b * Co, Co), :] = (
            jnp.dot(w, y[b * Ci:(b + 1) * Ci, :], preferred_element_type=jnp.float32) + bias
        )


def multiscale_tta_forward(x, conv_w, conv_b, size_offsets):
    B, Ci, H, W = x.shape
    Co = conv_w.shape[0]
    HW = H * W

    offsets_key = tuple(_split_offset(o) for o in size_offsets)
    q = composite_operator(H, W, offsets_key)            # [HW, HW], device-cached

    x2 = x.reshape(B * Ci, HW).astype(jnp.float32)       # lane-dense input slab
    w2 = conv_w.astype(jnp.float32)
    b2 = conv_b.reshape(Co, 1).astype(jnp.float32)

    out2 = pl.pallas_call(
        partial(_mstta_kernel, B=B, Ci=Ci, Co=Co),
        out_shape=jax.ShapeDtypeStruct((B * Co, HW), jnp.float32),
        grid=(1,),  # whole problem fits VMEM comfortably at these sizes -> one step
        in_specs=[
            pl.BlockSpec((B * Ci, HW), lambda i: (0, 0)),   # x slab
            pl.BlockSpec((HW, HW), lambda i: (0, 0)),       # fused composite Q
            pl.BlockSpec((Co, Ci), lambda i: (0, 0)),       # conv weight
            pl.BlockSpec((Co, 1), lambda i: (0, 0)),        # conv bias column
        ],
        out_specs=pl.BlockSpec((B * Co, HW), lambda i: (0, 0)),  # lane-dense output slab
        compiler_params=pltpu.CompilerParams(
            dimension_semantics=("arbitrary",)),
    )(x2, q, w2, b2)

    return out2.reshape(B, Co, H, W)


# ----------------------------------------------------------------------------
# Pure-JAX reference (separable matrices, original op order) for a sanity check
# ----------------------------------------------------------------------------
def reference_forward(x, conv_w, conv_b, size_offsets):
    outs = []
    B, Ci, H, W = x.shape
    for off in size_offsets:
        ro, co = _split_offset(off)
        Hs, Ws = H + ro, W + co
        ra = jnp.asarray(make_resize_matrix(H, Hs, False), dtype=jnp.float32)
        ca = jnp.asarray(make_resize_matrix(W, Ws, False), dtype=jnp.float32)
        rd = jnp.asarray(make_resize_matrix(Hs, H, True), dtype=jnp.float32)
        cd = jnp.asarray(make_resize_matrix(Ws, W, True), dtype=jnp.float32)
        xs = jnp.einsum("ph,bchw->bcpw", ra, x)
        xs = jnp.einsum("qw,bcpw->bcpq", ca, xs)
        y = jnp.einsum("oc,bcpq->bopq", conv_w, xs) + conv_b.reshape(1, -1, 1, 1)
        z = jnp.einsum("hp,bopq->bohq", rd, y)
        z = jnp.einsum("wq,bohq->bohw", cd, z)
        outs.append(z)
    return jnp.mean(jnp.stack(outs), axis=0)


if __name__ == "__main__":
    key = jax.random.PRNGKey(0)
    kx, kw, kb = jax.random.split(key, 3)

    B, Ci, Co, H, W = 2, 4, 4, 16, 16
    size_offsets = [0, 8, -8]

    x = jax.random.normal(kx, (B, Ci, H, W), dtype=jnp.float32)
    # deterministic synthetic "model" params: 1x1 conv weight [Co, Ci] and bias [Co]
    conv_w = jax.random.normal(kw, (Co, Ci), dtype=jnp.float32) * 0.25
    conv_b = jax.random.normal(kb, (Co,), dtype=jnp.float32) * 0.1

    out = multiscale_tta_forward(x, conv_w, conv_b, size_offsets)
    out = jax.block_until_ready(out)

    ref = reference_forward(x, conv_w, conv_b, size_offsets)
    assert out.shape == (B, Co, H, W), out.shape
    if not np.allclose(np.asarray(out), np.asarray(ref), atol=1e-3, rtol=1e-3):
        raise AssertionError("Pallas MultiscaleTTA output mismatch vs JAX reference")

    print("KERNEL_OK")
</pallas_src>

<mosaic_0001>
module attributes {stable_mosaic.version = 11 : i64} {
  func.func @_mstta_kernel(%arg0: i32, %arg1: memref<8x256xf32, #tpu.memory_space<vmem>>, %arg2: memref<256x256xf32, #tpu.memory_space<vmem>>, %arg3: memref<4x4xf32, #tpu.memory_space<vmem>>, %arg4: memref<4x1xf32, #tpu.memory_space<vmem>>, %arg5: memref<8x256xf32, #tpu.memory_space<vmem>>) attributes {dimension_semantics = [#tpu.dimension_semantics<arbitrary>], iteration_bounds = array<i64: 1>, scalar_prefetch = 0 : i64, scratch_operands = 0 : i64, tpu.core_type = #tpu.core_type<tc>, window_params = [{pipeline_mode = #tpu.pipeline_mode<synchronous>, transform_indices = @transform_0, window_bounds = array<i64: 8, 256>}, {pipeline_mode = #tpu.pipeline_mode<synchronous>, transform_indices = @transform_1, window_bounds = array<i64: 256, 256>}, {pipeline_mode = #tpu.pipeline_mode<synchronous>, transform_indices = @transform_2, window_bounds = array<i64: 4, 4>}, {pipeline_mode = #tpu.pipeline_mode<synchronous>, transform_indices = @transform_3, window_bounds = array<i64: 4, 1>}, {pipeline_mode = #tpu.pipeline_mode<synchronous>, transform_indices = @transform_4, window_bounds = array<i64: 8, 256>}]} {
    %c0 = arith.constant 0 : index
    %c0_0 = arith.constant 0 : index
    %0 = vector.load %arg1[%c0, %c0_0] : memref<8x256xf32, #tpu.memory_space<vmem>>, vector<8x256xf32>
    %c0_1 = arith.constant 0 : index
    %c0_2 = arith.constant 0 : index
    %1 = vector.load %arg2[%c0_1, %c0_2] : memref<256x256xf32, #tpu.memory_space<vmem>>, vector<256x256xf32>
    %cst = arith.constant dense<0.000000e+00> : vector<8x256xf32>
    %2 = tpu.matmul %0, %1, %cst {dimension_numbers = #tpu.dot_dimension_numbers<[1], [0], [0], [1], [0, 0, 1, 1], [], []>} : vector<8x256xf32>, vector<256x256xf32>, vector<8x256xf32> -> vector<8x256xf32>
    %c0_3 = arith.constant 0 : index
    %c0_4 = arith.constant 0 : index
    %3 = vector.load %arg3[%c0_3, %c0_4] : memref<4x4xf32, #tpu.memory_space<vmem>>, vector<4x4xf32>
    %c0_5 = arith.constant 0 : index
    %c0_6 = arith.constant 0 : index
    %4 = vector.load %arg4[%c0_5, %c0_6] : memref<4x1xf32, #tpu.memory_space<vmem>>, vector<4x1xf32>
    %5 = vector.extract_strided_slice %2 {offsets = [0, 0], sizes = [4, 256], strides = [1, 1]} : vector<8x256xf32> to vector<4x256xf32>
    %cst_7 = arith.constant dense<0.000000e+00> : vector<4x256xf32>
    %6 = tpu.matmul %3, %5, %cst_7 {dimension_numbers = #tpu.dot_dimension_numbers<[1], [0], [0], [1], [0, 0, 1, 1], [], []>} : vector<4x4xf32>, vector<4x256xf32>, vector<4x256xf32> -> vector<4x256xf32>
    %7 = vector.broadcast %4 : vector<4x1xf32> to vector<4x256xf32>
    %8 = arith.addf %6, %7 : vector<4x256xf32>
    %c0_8 = arith.constant 0 : index
    %c0_9 = arith.constant 0 : index
    %9 = vector.load %arg5[%c0_8, %c0_9] : memref<8x256xf32, #tpu.memory_space<vmem>>, vector<4x256xf32>
    tpu.vector_store %arg5[%c0_8, %c0_9], %8 {strides = array<i32>} : memref<8x256xf32, #tpu.memory_space<vmem>>, vector<4x256xf32>,
    %10 = vector.extract_strided_slice %2 {offsets = [4, 0], sizes = [4, 256], strides = [1, 1]} : vector<8x256xf32> to vector<4x256xf32>
    %cst_10 = arith.constant dense<0.000000e+00> : vector<4x256xf32>
    %11 = tpu.matmul %3, %10, %cst_10 {dimension_numbers = #tpu.dot_dimension_numbers<[1], [0], [0], [1], [0, 0, 1, 1], [], []>} : vector<4x4xf32>, vector<4x256xf32>, vector<4x256xf32> -> vector<4x256xf32>
    %12 = vector.broadcast %4 : vector<4x1xf32> to vector<4x256xf32>
    %13 = arith.addf %11, %12 : vector<4x256xf32>
    %c4 = arith.constant 4 : index
    %c0_11 = arith.constant 0 : index
    %14 = vector.load %arg5[%c4, %c0_11] : memref<8x256xf32, #tpu.memory_space<vmem>>, vector<4x256xf32>
    tpu.vector_store %arg5[%c4, %c0_11], %13 {strides = array<i32>} : memref<8x256xf32, #tpu.memory_space<vmem>>, vector<4x256xf32>,
    return
  }
  func.func @transform_0(%arg0: i32) -> (i32, i32) {
    %c0_i32 = arith.constant 0 : i32
    %c0_i32_0 = arith.constant 0 : i32
    %c0_i32_1 = arith.constant 0 : i32
    return %c0_i32, %c0_i32_0 : i32, i32
  }
  func.func @transform_1(%arg0: i32) -> (i32, i32) {
    %c0_i32 = arith.constant 0 : i32
    %c0_i32_0 = arith.constant 0 : i32
    %c0_i32_1 = arith.constant 0 : i32
    return %c0_i32, %c0_i32_0 : i32, i32
  }
  func.func @transform_2(%arg0: i32) -> (i32, i32) {
    %c0_i32 = arith.constant 0 : i32
    %c0_i32_0 = arith.constant 0 : i32
    %c0_i32_1 = arith.constant 0 : i32
    return %c0_i32, %c0_i32_0 : i32, i32
  }
  func.func @transform_3(%arg0: i32) -> (i32, i32) {
    %c0_i32 = arith.constant 0 : i32
    %c0_i32_0 = arith.constant 0 : i32
    %c0_i32_1 = arith.constant 0 : i32
    return %c0_i32, %c0_i32_0 : i32, i32
  }
  func.func @transform_4(%arg0: i32) -> (i32, i32) {
    %c0_i32 = arith.constant 0 : i32
    %c0_i32_0 = arith.constant 0 : i32
    %c0_i32_1 = arith.constant 0 : i32
    return %c0_i32, %c0_i32_0 : i32, i32
  }
}

</mosaic_0001>

<llo_original>
// kernel: tpu_custom_call.1
$region0: #{tpu_custom_call.1}
  #allocation0 [shape = 'u32[]', space=smem, size = 0x4, offset = 0x4, fixed_abs, tag = 'smem constant byte address 0x4 - core index']
  #allocation1 [shape = 'u32[72,128]{1,0:T(1,128)}', space=vmem, size = 0x9000, scoped, tag = 'internal scratch']
  %s0 = inlined_call_operand.hbm [shape: f32[8,256], index: 0, kind: input, shape index: {}]
  %s1 = inlined_call_operand.hbm [shape: f32[256,256], index: 1, kind: input, shape index: {}]
  %s2 = inlined_call_operand.vmem [shape: f32[4,4], index: 2, kind: input, shape index: {}]
  %s3 = inlined_call_operand.vmem [shape: f32[4,1], index: 3, kind: input, shape index: {}]
  %s4 = inlined_call_operand.hbm [shape: f32[8,256], index: 4, kind: output, shape index: {}]
  %s5 = sld [smem:[#allocation0]]
  $region34: #{tpu_custom_call.1} parent=0
    _
  %s7 = ssub.s32 1, %s5
  %s8 = scalar_select 0, %s7, %s5
  $region1: #{tpu_custom_call.1} parent=0
    #allocation2 [shape = 'u8[8192]{0}', space=vmem, size = 0x2000, scoped, tag = 'input window, operand 0, single buffered']
    #allocation3 [shape = 's32[1]{0}', space=sflag, size = 0x4, scoped, tag = 'scoped memory for tpu_custom_call.1']
    #allocation4 [shape = 's32[1]{0}', space=sflag, size = 0x4, scoped, tag = 'scoped memory for tpu_custom_call.1']
    #allocation5 [shape = 'u8[262144]{0}', space=vmem, size = 0x40000, scoped, tag = 'input window, operand 1, single buffered']
    #allocation6 [shape = 's32[1]{0}', space=sflag, size = 0x4, scoped, tag = 'scoped memory for tpu_custom_call.1']
    #allocation7 [shape = 'u8[8192]{0}', space=vmem, size = 0x2000, scoped, tag = 'output window, operand 0, single buffered']
    %9 = vsyncpa [#allocation3], 0
    %10 = vsyncpa [#allocation6], 0
    %11 = vsyncpa [#allocation4], 0
    // Predicated region
    $region2: #{tpu_custom_call.1} parent=1 // pred_check
      _
    $region3: #{tpu_custom_call.1} parent=1 // pred_check_branch
      %13 = sbr.rel (0) target = $region5
    $region4: #{tpu_custom_call.1} parent=1 // pred_region
      %15 = vsyncadd [#allocation3], 0
      %s17 = sshll.u32 %s0, 4
      %s18 = int_to_ptr.hbm [resolvable:$true] %s17
      %s19 = sshll.u32 [#allocation2], 4
      %s20 = int_to_ptr.vmem [resolvable:$true] %s19
      %22 = dma.hbm_to_vmem [thread:$0]  %s18, 256, %s20, [#allocation3]
    $region5: #{tpu_custom_call.1} parent=1 // pred_fallthru
      _
    // Predicated region
    $region6: #{tpu_custom_call.1} parent=1 // pred_check
      _
    $region7: #{tpu_custom_call.1} parent=1 // pred_check_branch
      %24 = sbr.rel (0) target = $region9
    $region8: #{tpu_custom_call.1} parent=1 // pred_region
      %26 = vsyncadd [#allocation6], 0
      %s27 = sshll.u32 %s1, 4
      %s28 = int_to_ptr.hbm [resolvable:$true] %s27
      %s29 = sshll.u32 [#allocation5], 4
      %s30 = int_to_ptr.vmem [resolvable:$true] %s29
      %35 = dma.hbm_to_vmem [thread:$0]  %s28, 8192, %s30, [#allocation6], 256, 256, 16
    $region9: #{tpu_custom_call.1} parent=1 // pred_fallthru
      _
    // Predicated region
    $region10: #{tpu_custom_call.1} parent=1 // pred_check
      _
    $region11: #{tpu_custom_call.1} parent=1 // pred_check_branch
      %37 = sbr.rel (0) target = $region13
    $region12: #{tpu_custom_call.1} parent=1 // pred_region
      _
    $region13: #{tpu_custom_call.1} parent=1 // pred_fallthru
      _
    // Predicated region
    $region14: #{tpu_custom_call.1} parent=1 // pred_check
      _
    $region15: #{tpu_custom_call.1} parent=1 // pred_check_branch
      %39 = sbr.rel (0) target = $region17
    $region16: #{tpu_custom_call.1} parent=1 // pred_region
      _
    $region17: #{tpu_custom_call.1} parent=1 // pred_fallthru
      _
    // Predicated region
    $region18: #{tpu_custom_call.1} parent=1 // pred_check
      _
    $region19: #{tpu_custom_call.1} parent=1 // pred_check_branch
      %41 = sbr.rel (0) target = $region21
    $region20: #{tpu_custom_call.1} parent=1 // pred_region
      %43 = dma.done [#allocation3], 256
    $region21: #{tpu_custom_call.1} parent=1 // pred_fallthru
      _
    // Predicated region
    $region22: #{tpu_custom_call.1} parent=1 // pred_check
      _
    $region23: #{tpu_custom_call.1} parent=1 // pred_check_branch
      %45 = sbr.rel (0) target = $region25
    $region24: #{tpu_custom_call.1} parent=1 // pred_region
      %47 = dma.done [#allocation6], 8192
    $region25: #{tpu_custom_call.1} parent=1 // pred_fallthru
      _
    %v48 = vld [vmem:[#allocation2] sm:$0xff]
    %v49 = vld [vmem:[#allocation2 + $0x8] sm:$0xff]
    %v50 = vld [vmem:[#allocation5] sm:$0xff]
    %v51 = vld [vmem:[#allocation5 + $0x8] sm:$0xff]
    %v52 = vld [vmem:[#allocation5 + $0x10] sm:$0xff]
    %v53 = vld [vmem:[#allocation5 + $0x18] sm:$0xff]
    %v54 = vld [vmem:[#allocation5 + $0x20] sm:$0xff]
    %v55 = vld [vmem:[#allocation5 + $0x28] sm:$0xff]
    %v56 = vld [vmem:[#allocation5 + $0x30] sm:$0xff]
    %v57 = vld [vmem:[#allocation5 + $0x38] sm:$0xff]
    %v58 = vld [vmem:[#allocation5 + $0x40] sm:$0xff]
    %v59 = vld [vmem:[#allocation5 + $0x48] sm:$0xff]
    %v60 = vld [vmem:[#allocation5 + $0x50] sm:$0xff]
    %v61 = vld [vmem:[#allocation5 + $0x58] sm:$0xff]
    %v62 = vld [vmem:[#allocation5 + $0x60] sm:$0xff]
    %v63 = vld [vmem:[#allocation5 + $0x68] sm:$0xff]
    %v64 = vld [vmem:[#allocation5 + $0x70] sm:$0xff]
    %v65 = vld [vmem:[#allocation5 + $0x78] sm:$0xff]
    %v66 = vld [vmem:[#allocation5 + $0x80] sm:$0xff]
    %v67 = vld [vmem:[#allocation5 + $0x88] sm:$0xff]
    %v68 = vld [vmem:[#allocation5 + $0x90] sm:$0xff]
    %v69 = vld [vmem:[#allocation5 + $0x98] sm:$0xff]
    %v70 = vld [vmem:[#allocation5 + $0xa0] sm:$0xff]
    %v71 = vld [vmem:[#allocation5 + $0xa8] sm:$0xff]
    %v72 = vld [vmem:[#allocation5 + $0xb0] sm:$0xff]
    %v73 = vld [vmem:[#allocation5 + $0xb8] sm:$0xff]
    %v74 = vld [vmem:[#allocation5 + $0xc0] sm:$0xff]
    %v75 = vld [vmem:[#allocation5 + $0xc8] sm:$0xff]
    %v76 = vld [vmem:[#allocation5 + $0xd0] sm:$0xff]
    %v77 = vld [vmem:[#allocation5 + $0xd8] sm:$0xff]
    %v78 = vld [vmem:[#allocation5 + $0xe0] sm:$0xff]
    %v79 = vld [vmem:[#allocation5 + $0xe8] sm:$0xff]
    %v80 = vld [vmem:[#allocation5 + $0xf0] sm:$0xff]
    %v81 = vld [vmem:[#allocation5 + $0xf8] sm:$0xff]
    %v82 = vld [vmem:[#allocation5 + $0x100] sm:$0xff]
    %v83 = vld [vmem:[#allocation5 + $0x108] sm:$0xff]
    %v84 = vld [vmem:[#allocation5 + $0x110] sm:$0xff]
    %v85 = vld [vmem:[#allocation5 + $0x118] sm:$0xff]
    %v86 = vld [vmem:[#allocation5 + $0x120] sm:$0xff]
    %v87 = vld [vmem:[#allocation5 + $0x128] sm:$0xff]
    %v88 = vld [vmem:[#allocation5 + $0x130] sm:$0xff]
    %v89 = vld [vmem:[#allocation5 + $0x138] sm:$0xff]
    %v90 = vld [vmem:[#allocation5 + $0x140] sm:$0xff]
    %v91 = vld [vmem:[#allocation5 + $0x148] sm:$0xff]
    %v92 = vld [vmem:[#allocation5 + $0x150] sm:$0xff]
    %v93 = vld [vmem:[#allocation5 + $0x158] sm:$0xff]
    %v94 = vld [vmem:[#allocation5 + $0x160] sm:$0xff]
    %v95 = vld [vmem:[#allocation5 + $0x168] sm:$0xff]
    %v96 = vld [vmem:[#allocation5 + $0x170] sm:$0xff]
    %v97 = vld [vmem:[#allocation5 + $0x178] sm:$0xff]
    %v98 = vld [vmem:[#allocation5 + $0x180] sm:$0xff]
    %v99 = vld [vmem:[#allocation5 + $0x188] sm:$0xff]
    %v100 = vld [vmem:[#allocation5 + $0x190] sm:$0xff]
    %v101 = vld [vmem:[#allocation5 + $0x198] sm:$0xff]
    %v102 = vld [vmem:[#allocation5 + $0x1a0] sm:$0xff]
    %v103 = vld [vmem:[#allocation5 + $0x1a8] sm:$0xff]
    %v104 = vld [vmem:[#allocation5 + $0x1b0] sm:$0xff]
    %v105 = vld [vmem:[#allocation5 + $0x1b8] sm:$0xff]
    %v106 = vld [vmem:[#allocation5 + $0x1c0] sm:$0xff]
    %v107 = vld [vmem:[#allocation5 + $0x1c8] sm:$0xff]
    %v108 = vld [vmem:[#allocation5 + $0x1d0] sm:$0xff]
    %v109 = vld [vmem:[#allocation5 + $0x1d8] sm:$0xff]
    %v110 = vld [vmem:[#allocation5 + $0x1e0] sm:$0xff]
    %v111 = vld [vmem:[#allocation5 + $0x1e8] sm:$0xff]
    %v112 = vld [vmem:[#allocation5 + $0x1f0] sm:$0xff]
    %v113 = vld [vmem:[#allocation5 + $0x1f8] sm:$0xff]
    %114 = vmatpush.msra.mxu0 %v80
    %115 = vmatpush.msra.mxu0 %v78
    %116 = vmatpush.msra.mxu0 %v76
    %117 = vmatpush.msra.mxu0 %v74
    %118 = vmatpush.msra.mxu0 %v72
    %119 = vmatpush.msra.mxu0 %v70
    %120 = vmatpush.msra.mxu0 %v68
    %121 = vmatpush.msra.mxu0 %v66
    %122 = vmatpush.msra.mxu0 %v64
    %123 = vmatpush.msra.mxu0 %v62
    %124 = vmatpush.msra.mxu0 %v60
    %125 = vmatpush.msra.mxu0 %v58
    %126 = vmatpush.msra.mxu0 %v56
    %127 = vmatpush.msra.mxu0 %v54
    %128 = vmatpush.msra.mxu0 %v52
    %129 = vmatpush.msra.mxu0 %v50
    %130 = vmatmul.f32.gmra.mxu0 %v48
    %v131 = vpop.f32.mrf.mxu0
    %v132 = vadd.f32 0.0, %v131
    %133 = vdwg.mxu0
    %134 = vmatpush.msra.mxu0 %v112
    %135 = vmatpush.msra.mxu0 %v110
    %136 = vmatpush.msra.mxu0 %v108
    %137 = vmatpush.msra.mxu0 %v106
    %138 = vmatpush.msra.mxu0 %v104
    %139 = vmatpush.msra.mxu0 %v102
    %140 = vmatpush.msra.mxu0 %v100
    %141 = vmatpush.msra.mxu0 %v98
    %142 = vmatpush.msra.mxu0 %v96
    %143 = vmatpush.msra.mxu0 %v94
    %144 = vmatpush.msra.mxu0 %v92
    %145 = vmatpush.msra.mxu0 %v90
    %146 = vmatpush.msra.mxu0 %v88
    %147 = vmatpush.msra.mxu0 %v86
    %148 = vmatpush.msra.mxu0 %v84
    %149 = vmatpush.msra.mxu0 %v82
    %150 = vmatmul.f32.gmra.mxu0 %v49
    %v151 = vpop.f32.mrf.mxu0
    %v152 = vadd.f32 %v132, %v151
    %153 = vdwg.mxu0
    %154 = vmatpush.msra.mxu0 %v81
    %155 = vmatpush.msra.mxu0 %v79
    %156 = vmatpush.msra.mxu0 %v77
    %157 = vmatpush.msra.mxu0 %v75
    %158 = vmatpush.msra.mxu0 %v73
    %159 = vmatpush.msra.mxu0 %v71
    %160 = vmatpush.msra.mxu0 %v69
    %161 = vmatpush.msra.mxu0 %v67
    %162 = vmatpush.msra.mxu0 %v65
    %163 = vmatpush.msra.mxu0 %v63
    %164 = vmatpush.msra.mxu0 %v61
    %165 = vmatpush.msra.mxu0 %v59
    %166 = vmatpush.msra.mxu0 %v57
    %167 = vmatpush.msra.mxu0 %v55
    %168 = vmatpush.msra.mxu0 %v53
    %169 = vmatpush.msra.mxu0 %v51
    %170 = vmatmul.f32.gmra.mxu0 %v48
    %v171 = vpop.f32.mrf.mxu0
    %v172 = vadd.f32 0.0, %v171
    %173 = vdwg.mxu0
    %174 = vmatpush.msra.mxu0 %v113
    %175 = vmatpush.msra.mxu0 %v111
    %176 = vmatpush.msra.mxu0 %v109
    %177 = vmatpush.msra.mxu0 %v107
    %178 = vmatpush.msra.mxu0 %v105
    %179 = vmatpush.msra.mxu0 %v103
    %180 = vmatpush.msra.mxu0 %v101
    %181 = vmatpush.msra.mxu0 %v99
    %182 = vmatpush.msra.mxu0 %v97
    %183 = vmatpush.msra.mxu0 %v95
    %184 = vmatpush.msra.mxu0 %v93
    %185 = vmatpush.msra.mxu0 %v91
    %186 = vmatpush.msra.mxu0 %v89
    %187 = vmatpush.msra.mxu0 %v87
    %188 = vmatpush.msra.mxu0 %v85
    %189 = vmatpush.msra.mxu0 %v83
    %190 = vmatmul.f32.gmra.mxu0 %v49
    %v191 = vpop.f32.mrf.mxu0
    %v192 = vadd.f32 %v172, %v191
    %193 = vdwg.mxu0
    %v194 = vld [vmem:[%s2] sm:$0xf]
    %v195 = vld [vmem:[%s3] sm:$0xf]
    %197 = vset.pattern.permute.xlu0 0
    %198 = vperm.xlu0 %197, %v195
    %v199 = vpop.permute.xlu0 %198
    %vm201 = vcmask 31744
    %v203 = vsel %vm201, %v194, 0
    %vm205 = vcmask 1043456
    %v207 = vsel %vm205, %v152, 0
    %v210 = vsel %vm205, %v192, 0
    %212 = vmatpush.msra.mxu0 0.0
    %213 = vmatpush.msra.mxu0 0.0
    %214 = vmatpush.msra.mxu0 0.0
    %215 = vmatpush.msra.mxu0 0.0
    %216 = vmatpush.msra.mxu0 0.0
    %217 = vmatpush.msra.mxu0 0.0
    %218 = vmatpush.msra.mxu0 0.0
    %219 = vmatpush.msra.mxu0 0.0
    %220 = vmatpush.msra.mxu0 0.0
    %221 = vmatpush.msra.mxu0 0.0
    %222 = vmatpush.msra.mxu0 0.0
    %223 = vmatpush.msra.mxu0 0.0
    %224 = vmatpush.msra.mxu0 0.0
    %225 = vmatpush.msra.mxu0 0.0
    %226 = vmatpush.msra.mxu0 0.0
    %227 = vmatpush.msra.mxu0 %v207
    %228 = vmatmul.f32.gmra.mxu0 %v203
    %v229 = vpop.f32.mrf.mxu0
    %v230 = vadd.f32 %v199, %v229
    %231 = vdwg.mxu0
    %232 = vmatpush.msra.mxu0 0.0
    %233 = vmatpush.msra.mxu0 0.0
    %234 = vmatpush.msra.mxu0 0.0
    %235 = vmatpush.msra.mxu0 0.0
    %236 = vmatpush.msra.mxu0 0.0
    %237 = vmatpush.msra.mxu0 0.0
    %238 = vmatpush.msra.mxu0 0.0
    %239 = vmatpush.msra.mxu0 0.0
    %240 = vmatpush.msra.mxu0 0.0
    %241 = vmatpush.msra.mxu0 0.0
    %242 = vmatpush.msra.mxu0 0.0
    %243 = vmatpush.msra.mxu0 0.0
    %244 = vmatpush.msra.mxu0 0.0
    %245 = vmatpush.msra.mxu0 0.0
    %246 = vmatpush.msra.mxu0 0.0
    %247 = vmatpush.msra.mxu0 %v210
    %248 = vmatmul.f32.gmra.mxu0 %v203
    %v249 = vpop.f32.mrf.mxu0
    %v250 = vadd.f32 %v199, %v249
    %251 = vdwg.mxu0
    %252 = vst [vmem:[#allocation7] sm:$0xf] %v230
    %253 = vst [vmem:[#allocation7 + $0x8] sm:$0xf] %v250
    %v254 = vrot.slane %v152, 4
    %v255 = vrot.slane %v192, 4
    %v256 = vsel %vm205, %v254, 0
    %v258 = vsel %vm205, %v255, 0
    %260 = vmatpush.msra.mxu0 0.0
    %261 = vmatpush.msra.mxu0 0.0
    %262 = vmatpush.msra.mxu0 0.0
    %263 = vmatpush.msra.mxu0 0.0
    %264 = vmatpush.msra.mxu0 0.0
    %265 = vmatpush.msra.mxu0 0.0
    %266 = vmatpush.msra.mxu0 0.0
    %267 = vmatpush.msra.mxu0 0.0
    %268 = vmatpush.msra.mxu0 0.0
    %269 = vmatpush.msra.mxu0 0.0
    %270 = vmatpush.msra.mxu0 0.0
    %271 = vmatpush.msra.mxu0 0.0
    %272 = vmatpush.msra.mxu0 0.0
    %273 = vmatpush.msra.mxu0 0.0
    %274 = vmatpush.msra.mxu0 0.0
    %275 = vmatpush.msra.mxu0 %v256
    %276 = vmatmul.f32.gmra.mxu0 %v203
    %v277 = vpop.f32.mrf.mxu0
    %v278 = vadd.f32 %v199, %v277
    %279 = vdwg.mxu0
    %280 = vmatpush.msra.mxu0 0.0
    %281 = vmatpush.msra.mxu0 0.0
    %282 = vmatpush.msra.mxu0 0.0
    %283 = vmatpush.msra.mxu0 0.0
    %284 = vmatpush.msra.mxu0 0.0
    %285 = vmatpush.msra.mxu0 0.0
    %286 = vmatpush.msra.mxu0 0.0
    %287 = vmatpush.msra.mxu0 0.0
    %288 = vmatpush.msra.mxu0 0.0
    %289 = vmatpush.msra.mxu0 0.0
    %290 = vmatpush.msra.mxu0 0.0
    %291 = vmatpush.msra.mxu0 0.0
    %292 = vmatpush.msra.mxu0 0.0
    %293 = vmatpush.msra.mxu0 0.0
    %294 = vmatpush.msra.mxu0 0.0
    %295 = vmatpush.msra.mxu0 %v258
    %296 = vmatmul.f32.gmra.mxu0 %v203
    %v297 = vpop.f32.mrf.mxu0
    %v298 = vadd.f32 %v199, %v297
    %299 = vdwg.mxu0
    %v302 = vrot.slane %v278, 4
    %v303 = vrot.slane %v298, 4
    %306 = vst [vmem:[#allocation7] sm:$0xf0] %v302
    %307 = vst [vmem:[#allocation7 + $0x8] sm:$0xf0] %v303
    // Predicated region
    $region26: #{tpu_custom_call.1} parent=1 // pred_check
      _
    $region27: #{tpu_custom_call.1} parent=1 // pred_check_branch
      %309 = sbr.rel (0) target = $region29
    $region28: #{tpu_custom_call.1} parent=1 // pred_region
      %311 = vsyncadd [#allocation4], 0
      %s313 = sshll.u32 [#allocation7], 4
      %s314 = int_to_ptr.vmem [resolvable:$true] %s313
      %s315 = sshll.u32 %s4, 4
      %s316 = int_to_ptr.hbm [resolvable:$true] %s315
      %318 = dma.vmem_to_hbm [thread:$0]  %s314, 256, %s316, [#allocation4]
    $region29: #{tpu_custom_call.1} parent=1 // pred_fallthru
      _
    // Predicated region
    $region30: #{tpu_custom_call.1} parent=1 // pred_check
      _
    $region31: #{tpu_custom_call.1} parent=1 // pred_check_branch
      %320 = sbr.rel (0) target = $region33
    $region32: #{tpu_custom_call.1} parent=1 // pred_region
      %322 = dma.done [#allocation4], 256
    $region33: #{tpu_custom_call.1} parent=1 // pred_fallthru
      _
    %323 = vsyncpa [#allocation3], 1
    %324 = vsyncpa [#allocation6], 1
    %325 = vsyncpa [#allocation4], 1

</llo_original>
